<compile_context>
chip_gen: v6e
topology: v6e:2x2x1
jax: 0.10.0
libtpu: 0.0.40
codegen_flags: <defaults>
</compile_context>

<pallas_src>
import functools

import jax
import jax.numpy as jnp
from jax import lax
from jax.experimental import pallas as pl
from jax.experimental.pallas import tpu as pltpu


# ---------------- pass 1: per-tile batch statistics of x ----------------------
def stats_kernel(x_ref, sum_ref, gram_ref):
    x = x_ref[0]                                          # (Cin, ts) f32
    # per-channel sum over the spatial (lane) axis -> (Cin, 1)
    sum_ref[0] = jnp.sum(x, axis=1, keepdims=True)
    # Gram over the spatial axis: contract lanes with lanes ("NT" matmul on MXU)
    gram_ref[0] = lax.dot_general(
        x, x, (((1,), (1,)), ((), ())), preferred_element_type=jnp.float32)


# ---------------- pass 2: fused conv(1x1x1) + BN affine + LeakyReLU -----------
def conv_bn_act_kernel(x_ref, w_ref, scale_ref, shift_ref, o_ref, *, negative_slope):
    x = x_ref[0]                                          # (Cin, ts)
    z = jnp.dot(w_ref[...], x, preferred_element_type=jnp.float32)   # (Cout, ts)
    z = z * scale_ref[...] + shift_ref[...]               # (Cout, 1) bcast over lanes
    o_ref[0] = jnp.where(z >= 0, z, negative_slope * z)


# ---------------- wrapper ------------------------------------------------------
def transition_block(x, w, b, gamma, beta, *, eps=1e-5, negative_slope=0.05, ts=2048):
    """x: (N, Cin, D, H, W) f32.  Returns (N, Cout, D, H, W) f32 (training-mode BN)."""
    del b  # conv bias cancels exactly under training-mode BatchNorm mean subtraction
    N, Cin, D, H, W = x.shape
    Cout = w.shape[0]
    S = D * H * W
    M = N * S                                   # true element count per channel

    x3 = x.reshape(N, Cin, S).astype(jnp.float32)         # pure reshape, no transpose
    Wm = w.reshape(Cout, Cin).astype(jnp.float32)

    # lane tile: multiple of 128, clamped to (padded) spatial size
    Sp = -(-S // 128) * 128
    ts = max(128, min((ts // 128) * 128, Sp))
    Sp = -(-Sp // ts) * ts
    if Sp != S:
        # zero columns contribute 0 to the sums/Gram; padded outputs are sliced off
        x3 = jnp.pad(x3, ((0, 0), (0, 0), (0, Sp - S)))
    gs = Sp // ts
    G = N * gs
    grid = (N, gs)

    # double-buffered in+out blocks (f32) with 2x headroom; cap below v7x's 64 MiB VMEM
    vmem_limit = int(min(max(16 * ts * (Cin + Cout), 32 * 1024 * 1024),
                         48 * 1024 * 1024))
    cparams = pltpu.CompilerParams(
        dimension_semantics=("parallel", "parallel"),     # no resident accumulators
        vmem_limit_bytes=vmem_limit)

    x_spec = pl.BlockSpec((1, Cin, ts), lambda n, s: (n, 0, s))

    # --- pass 1: per-block partial sum(x) and Gram(x) ---
    psum, pgram = pl.pallas_call(
        stats_kernel,
        out_shape=(jax.ShapeDtypeStruct((G, Cin, 1), jnp.float32),
                   jax.ShapeDtypeStruct((G, Cin, Cin), jnp.float32)),
        grid_spec=pltpu.PrefetchScalarGridSpec(
            num_scalar_prefetch=0,
            grid=grid,
            in_specs=[x_spec],
            out_specs=[
                pl.BlockSpec((1, Cin, 1), lambda n, s: (n * gs + s, 0, 0)),
                pl.BlockSpec((1, Cin, Cin), lambda n, s: (n * gs + s, 0, 0)),
            ]),
        compiler_params=cparams,
    )(x3)

    # --- glue: O(C^2) fold of batch stats into a per-channel scale/shift -------
    sx = jnp.sum(psum, axis=0)[:, 0]                      # (Cin,)   sum_m x
    Gm = jnp.sum(pgram, axis=0)                           # (Cin, Cin) sum_m x x^T
    cnt = jnp.float32(M)
    # mean/var of y = W x  (bias dropped: cancels in BN); exact f32 elementwise folds
    mean = jnp.sum(Wm * sx[None, :], axis=1) / cnt                        # (Cout,)
    sumsq = jnp.sum(jnp.sum(Wm[:, :, None] * Gm[None, :, :], axis=1) * Wm, axis=1)
    var = jnp.maximum(sumsq / cnt - mean * mean, 0.0)     # guard cancellation
    scale = gamma.astype(jnp.float32) * lax.rsqrt(var + eps)              # (Cout,)
    shift = beta.astype(jnp.float32) - mean * scale                       # (Cout,)

    # --- pass 2: fused conv + BN + LeakyReLU (lane-dense stores) ---------------
    out3 = pl.pallas_call(
        functools.partial(conv_bn_act_kernel, negative_slope=negative_slope),
        out_shape=jax.ShapeDtypeStruct((N, Cout, Sp), jnp.float32),
        grid_spec=pltpu.PrefetchScalarGridSpec(
            num_scalar_prefetch=0,
            grid=grid,
            in_specs=[
                x_spec,
                pl.BlockSpec((Cout, Cin), lambda n, s: (0, 0)),
                pl.BlockSpec((Cout, 1), lambda n, s: (0, 0)),
                pl.BlockSpec((Cout, 1), lambda n, s: (0, 0)),
            ],
            out_specs=pl.BlockSpec((1, Cout, ts), lambda n, s: (n, 0, s))),
        compiler_params=cparams,
    )(x3, Wm, scale.reshape(Cout, 1), shift.reshape(Cout, 1))

    if Sp != S:
        out3 = out3[:, :, :S]
    return out3.reshape(N, Cout, D, H, W)


# ---------------- pure-JAX reference -------------------------------------------
def transition_block_ref(x, w, b, gamma, beta, eps=1e-5, negative_slope=0.05):
    Cout = w.shape[0]
    y = jnp.einsum("ncdhw,oc->nodhw", x, w.reshape(Cout, -1)) + b.reshape(1, Cout, 1, 1, 1)
    mean = jnp.mean(y, axis=(0, 2, 3, 4), keepdims=True)
    var = jnp.mean((y - mean) ** 2, axis=(0, 2, 3, 4), keepdims=True)
    z = (y - mean) * jax.lax.rsqrt(var + eps)
    z = z * gamma.reshape(1, Cout, 1, 1, 1) + beta.reshape(1, Cout, 1, 1, 1)
    return jnp.where(z >= 0, z, negative_slope * z)


if __name__ == "__main__":
    key = jax.random.PRNGKey(0)
    k_x, k_w, k_b, k_g, k_be = jax.random.split(key, 5)

    N, Cin, Cout, D, H, W = 2, 4, 8, 8, 8, 8

    # Snap x/w to bf16-representable values so the MXU's default (bf16-input)
    # matmul precision introduces no rounding vs the f32 reference -> tight check.
    x = jax.random.normal(k_x, (N, Cin, D, H, W), jnp.float32)
    x = x.astype(jnp.bfloat16).astype(jnp.float32)
    w = (jax.random.normal(k_w, (Cout, Cin, 1, 1, 1), jnp.float32) * 0.1)
    w = w.astype(jnp.bfloat16).astype(jnp.float32)
    b = jax.random.normal(k_b, (Cout,), jnp.float32) * 0.1
    gamma = 1.0 + 0.1 * jax.random.normal(k_g, (Cout,), jnp.float32)
    beta = 0.1 * jax.random.normal(k_be, (Cout,), jnp.float32)

    out = jax.block_until_ready(transition_block(x, w, b, gamma, beta))
    ref = transition_block_ref(x, w, b, gamma, beta)

    assert out.shape == (N, Cout, D, H, W)
    err = float(jnp.max(jnp.abs(out - ref)))
    assert err < 1e-3, f"max abs err {err}"
    print("KERNEL_OK")
</pallas_src>

<mosaic_0001>
module attributes {stable_mosaic.version = 11 : i64} {
  func.func @stats_kernel(%arg0: i32, %arg1: i32, %arg2: memref<1x4x512xf32, #tpu.memory_space<vmem>>, %arg3: memref<1x4x1xf32, #tpu.memory_space<vmem>>, %arg4: memref<1x4x4xf32, #tpu.memory_space<vmem>>) attributes {dimension_semantics = [#tpu.dimension_semantics<parallel>, #tpu.dimension_semantics<parallel>], iteration_bounds = array<i64: 2, 1>, scalar_prefetch = 0 : i64, scratch_operands = 0 : i64, tpu.core_type = #tpu.core_type<tc>, window_params = [{transform_indices = @transform_0, window_bounds = array<i64: 1, 4, 512>}, {transform_indices = @transform_1, window_bounds = array<i64: 1, 4, 1>}, {transform_indices = @transform_2, window_bounds = array<i64: 1, 4, 4>}]} {
    %c0 = arith.constant 0 : index
    %c0_0 = arith.constant 0 : index
    %c0_1 = arith.constant 0 : index
    %0 = vector.load %arg2[%c0, %c0_0, %c0_1] : memref<1x4x512xf32, #tpu.memory_space<vmem>>, vector<1x4x512xf32>
    %1 = vector.shape_cast %0 : vector<1x4x512xf32> to vector<4x512xf32>
    %cst = arith.constant dense<0.000000e+00> : vector<4xf32>
    %2 = vector.multi_reduction <add>, %1, %cst [1] : vector<4x512xf32> to vector<4xf32>
    %3 = vector.shape_cast %2 : vector<4xf32> to vector<4x1xf32>
    %c0_2 = arith.constant 0 : index
    %c0_3 = arith.constant 0 : index
    %c0_4 = arith.constant 0 : index
    %4 = vector.load %arg3[%c0_2, %c0_3, %c0_4] : memref<1x4x1xf32, #tpu.memory_space<vmem>>, vector<1x4x1xf32>
    %5 = vector.shape_cast %4 : vector<1x4x1xf32> to vector<4x1xf32>
    %6 = vector.shape_cast %3 : vector<4x1xf32> to vector<1x4x1xf32>
    tpu.vector_store %arg3[%c0_2, %c0_3, %c0_4], %6 {strides = array<i32>} : memref<1x4x1xf32, #tpu.memory_space<vmem>>, vector<1x4x1xf32>,
    %cst_5 = arith.constant dense<0.000000e+00> : vector<4x4xf32>
    %7 = tpu.matmul %1, %1, %cst_5 {dimension_numbers = #tpu.dot_dimension_numbers<[1], [1], [0], [0], [0, 0, 1, 0], [], []>} : vector<4x512xf32>, vector<4x512xf32>, vector<4x4xf32> -> vector<4x4xf32>
    %c0_6 = arith.constant 0 : index
    %c0_7 = arith.constant 0 : index
    %c0_8 = arith.constant 0 : index
    %8 = vector.load %arg4[%c0_6, %c0_7, %c0_8] : memref<1x4x4xf32, #tpu.memory_space<vmem>>, vector<1x4x4xf32>
    %9 = vector.shape_cast %8 : vector<1x4x4xf32> to vector<4x4xf32>
    %10 = vector.shape_cast %7 : vector<4x4xf32> to vector<1x4x4xf32>
    tpu.vector_store %arg4[%c0_6, %c0_7, %c0_8], %10 {strides = array<i32>} : memref<1x4x4xf32, #tpu.memory_space<vmem>>, vector<1x4x4xf32>,
    return
  }
  func.func @transform_0(%arg0: i32, %arg1: i32) -> (i32, i32, i32) {
    %c0_i32 = arith.constant 0 : i32
    %c0_i32_0 = arith.constant 0 : i32
    return %arg0, %c0_i32, %arg1 : i32, i32, i32
  }
  func.func @transform_1(%arg0: i32, %arg1: i32) -> (i32, i32, i32) {
    %c1_i32 = arith.constant 1 : i32
    %0 = arith.muli %arg0, %c1_i32 : i32
    %1 = arith.addi %0, %arg1 : i32
    %c0_i32 = arith.constant 0 : i32
    %c0_i32_0 = arith.constant 0 : i32
    %c0_i32_1 = arith.constant 0 : i32
    return %1, %c0_i32, %c0_i32_0 : i32, i32, i32
  }
  func.func @transform_2(%arg0: i32, %arg1: i32) -> (i32, i32, i32) {
    %c1_i32 = arith.constant 1 : i32
    %0 = arith.muli %arg0, %c1_i32 : i32
    %1 = arith.addi %0, %arg1 : i32
    %c0_i32 = arith.constant 0 : i32
    %c0_i32_0 = arith.constant 0 : i32
    %c0_i32_1 = arith.constant 0 : i32
    return %1, %c0_i32, %c0_i32_0 : i32, i32, i32
  }
}

</mosaic_0001>

<llo_original>
// kernel: tpu_custom_call.1
$region0: #{tpu_custom_call.1}
  #allocation0 [shape = 'u32[]', space=smem, size = 0x4, offset = 0x4, fixed_abs, tag = 'smem constant byte address 0x4 - core index']
  #allocation1 [shape = 'u32[144,128]{1,0:T(1,128)}', space=vmem, size = 0x12000, scoped, tag = 'internal scratch']
  %s0 = inlined_call_operand.hbm [shape: f32[2,4,512], index: 0, kind: input, shape index: {}]
  %s1 = inlined_call_operand.vmem [shape: f32[2,4,1], index: 1, kind: output, shape index: {0}]
  %s2 = inlined_call_operand.hbm [shape: f32[2,4,4], index: 2, kind: output, shape index: {1}]
  %3 = xla_tuple %s1, %s2
  %s4 = sld [smem:[#allocation0]]
  $region49: #{tpu_custom_call.1} parent=0
    _
  %s6 = ssub.s32 1, %s4
  %s7 = scalar_select 0, %s6, %s4
  $region1: #{tpu_custom_call.1} parent=0
    #allocation2 [shape = 'u8[16384]{0}', space=vmem, size = 0x4000, scoped, tag = 'input window, operand 0']
    #allocation3 [shape = 's32[2]{0}', space=sflag, size = 0x8, scoped, tag = 'scoped memory for tpu_custom_call.1']
    #allocation4 [shape = 's32[2]{0}', space=sflag, size = 0x8, scoped, tag = 'scoped memory for tpu_custom_call.1']
    #allocation5 [shape = 'u8[4096]{0}', space=vmem, size = 0x1000, scoped, tag = 'output window, operand 1']
    %8 = vsyncpa [#allocation3], 0
    %s9 = scalar_lea.sflag [#allocation3], 1
    %10 = vsyncpa %s9, 0
    %11 = vsyncpa [#allocation4], 0
    %s12 = scalar_lea.sflag [#allocation4], 1
    %13 = vsyncpa %s12, 0
    loop: start=0, step=1, limit=4
    $region2: #{tpu_custom_call.1} parent=1 // loop_pre_header
      _
    $region3: #{tpu_custom_call.1} parent=1 // loop_header
      %s15 = sphi 0, %s19
      %p16 = scmp.ge.s32.totalorder %s15, 4
      %s22 = sphi 0, %s34
      %s23 = sphi 0, %s30
      %s24 = sphi 0, %s22
      %s25 = sphi 0, %s23
      %s26 = sphi 0, %s24
      %s27 = sphi 0, %s25
      %s39 = sphi 0, %s41
      %s42 = sphi 0, %s39
      %s43 = sphi 0, %s42
      %s59 = sphi 0, %s43
      %s67 = sphi 0, %s69
      %s70 = sphi 0, %s67
      %s71 = sphi 0, %s70
      %s87 = sphi 0, %s71
      %s95 = sphi 0, %s97
      %s98 = sphi 0, %s95
      %s99 = sphi 0, %s98
      %s115 = sphi 0, %s99
    $region4: #{tpu_custom_call.1} parent=1 // loop_header_branch
      %18 = sbr.rel (%p16) target = $region8
    $region5: #{tpu_custom_call.1} parent=1 // loop_body
      %s20 = ssub.s32 %s15, 1
      %s21 = ssub.s32 %s15, 2
      %s28 = sadd.s32 1, %s23
      %p29 = scmp.ge.s32.totalorder %s28, 1
      %s30 = scalar_select %p29, 0, %s28
      %s31 = sadd.s32 1, %s22
      %s32 = scalar_select %p29, %s31, %s22
      %p33 = scmp.ge.s32.totalorder %s32, 2
      %s34 = scalar_select %p33, 0, %s32
      %s35 = ssub.s32 %s22, %s34
      %s36 = ssub.s32 %s23, %s30
      %s37 = sor.u32 %s35, %s36
      %p38 = scmp.eq.s32.totalorder %s37, 0
      %s40 = sadd.s32 %s39, 1
      %s41 = scalar_select %p38, %s39, %s40
      %p44 = pneg %p38
      %p45 = scmp.eq.s32.totalorder %s15, 1
      %p46 = por %p44, %p45
      %p47 = scmp.ne.s32.totalorder %s39, %s42
      %p48 = scmp.eq.s32.totalorder %s15, 0
      %p49 = por %p47, %p48
      %p50 = scmp.ne.s32.totalorder %s39, %s42
      %p51 = scmp.eq.s32.totalorder %s20, 1
      %p52 = por %p50, %p51
      %p53 = scmp.ne.s32.totalorder %s42, %s43
      %p54 = scmp.eq.s32.totalorder %s20, 0
      %p55 = por %p53, %p54
      %p56 = scmp.ne.s32.totalorder %s42, %s43
      %p57 = scmp.eq.s32.totalorder %s21, 1
      %p58 = por %p56, %p57
      %p60 = scmp.ne.s32.totalorder %s43, %s59
      %p61 = scmp.eq.s32.totalorder %s21, 0
      %p62 = por %p60, %p61
      %s63 = sadd.s32 %s22, %s23
      %s64 = sadd.s32 %s34, %s30
      %s65 = ssub.s32 %s63, %s64
      %p66 = scmp.eq.s32.totalorder %s65, 0
      %s68 = sadd.s32 %s67, 1
      %s69 = scalar_select %p66, %s67, %s68
      %p72 = pneg %p66
      %p73 = scmp.eq.s32.totalorder %s15, 1
      %p74 = por %p72, %p73
      %p75 = scmp.ne.s32.totalorder %s67, %s70
      %p76 = scmp.eq.s32.totalorder %s15, 0
      %p77 = por %p75, %p76
      %p78 = scmp.ne.s32.totalorder %s67, %s70
      %p79 = scmp.eq.s32.totalorder %s20, 1
      %p80 = por %p78, %p79
      %p81 = scmp.ne.s32.totalorder %s70, %s71
      %p82 = scmp.eq.s32.totalorder %s20, 0
      %p83 = por %p81, %p82
      %p84 = scmp.ne.s32.totalorder %s70, %s71
      %p85 = scmp.eq.s32.totalorder %s21, 1
      %p86 = por %p84, %p85
      %p88 = scmp.ne.s32.totalorder %s71, %s87
      %p89 = scmp.eq.s32.totalorder %s21, 0
      %p90 = por %p88, %p89
      %s91 = sadd.s32 %s22, %s23
      %s92 = sadd.s32 %s34, %s30
      %s93 = ssub.s32 %s91, %s92
      %p94 = scmp.eq.s32.totalorder %s93, 0
      %s96 = sadd.s32 %s95, 1
      %s97 = scalar_select %p94, %s95, %s96
      %p100 = pneg %p94
      %p101 = scmp.eq.s32.totalorder %s15, 1
      %p102 = por %p100, %p101
      %p103 = scmp.ne.s32.totalorder %s95, %s98
      %p104 = scmp.eq.s32.totalorder %s15, 0
      %p105 = por %p103, %p104
      %p106 = scmp.ne.s32.totalorder %s95, %s98
      %p107 = scmp.eq.s32.totalorder %s20, 1
      %p108 = por %p106, %p107
      %p109 = scmp.ne.s32.totalorder %s98, %s99
      %p110 = scmp.eq.s32.totalorder %s20, 0
      %p111 = por %p109, %p110
      %p112 = scmp.ne.s32.totalorder %s98, %s99
      %p113 = scmp.eq.s32.totalorder %s21, 1
      %p114 = por %p112, %p113
      %p116 = scmp.ne.s32.totalorder %s99, %s115
      %p117 = scmp.eq.s32.totalorder %s21, 0
      %p118 = por %p116, %p117
      %p119 = scmp.le.s32.totalorder 1, %s15
      %p120 = scmp.lt.s32.totalorder %s15, 3
      %p121 = pnand %p119, %p120
      %p122 = pneg %p121
      // Predicated region
      $region9: #{tpu_custom_call.1} parent=5 // pred_check
        _
      $region10: #{tpu_custom_call.1} parent=5 // pred_check_branch
        %124 = sbr.rel (%p121) target = $region12
      $region11: #{tpu_custom_call.1} parent=5 // pred_region
        %s125 = ssub.s32 %s15, 1
      $region12: #{tpu_custom_call.1} parent=5 // pred_fallthru
        _
      %p126 = scmp.lt.s32.totalorder %s15, 2
      // Predicated region
      $region13: #{tpu_custom_call.1} parent=5 // pred_check
        %p127 = pneg %p126
      $region14: #{tpu_custom_call.1} parent=5 // pred_check_branch
        %129 = sbr.rel (%p127) target = $region16
      $region15: #{tpu_custom_call.1} parent=5 // pred_region
        // Predicated region
        $region17: #{tpu_custom_call.1} parent=15 // pred_check
          %p130 = pneg %p49
        $region18: #{tpu_custom_call.1} parent=15 // pred_check_branch
          %132 = sbr.rel (%p130) target = $region20
        $region19: #{tpu_custom_call.1} parent=15 // pred_region
          %s133 = sand.u32 %s39, 1
          %s134 = scalar_lea.sflag [#allocation3], %s133
          %s135 = sand.u32 %s39, 1
          %s136 = smul.addr %s135, 16
          %s137 = scalar_lea.vmem [#allocation2], %s136
          %s138 = smul.u32 4, %s23
          %s140 = ssub.s32 256, 256
          %141 = vsyncadd %s134, %s140
          %s142 = smul.addr %s22, 4
          %s143 = sadd.s32 %s138, %s142
          %s144 = smul.addr %s143, 64
          %s145 = scalar_lea.hbm %s0, %s144
          %s147 = sshll.u32 %s137, 4
          %s148 = int_to_ptr.vmem [resolvable:$true] %s147
          %150 = dma.hbm_to_vmem [thread:$0]  %s145, 256, %s148, %s134
        $region20: #{tpu_custom_call.1} parent=15 // pred_fallthru
          _
      $region16: #{tpu_custom_call.1} parent=5 // pred_fallthru
        _
      %p151 = scmp.le.s32.totalorder 1, %s15
      %p152 = scmp.lt.s32.totalorder %s15, 3
      %p153 = pnand %p151, %p152
      %p154 = pneg %p153
      // Predicated region
      $region21: #{tpu_custom_call.1} parent=5 // pred_check
        _
      $region22: #{tpu_custom_call.1} parent=5 // pred_check_branch
        %156 = sbr.rel (%p153) target = $region24
      $region23: #{tpu_custom_call.1} parent=5 // pred_region
        %s157 = ssub.s32 %s15, 1
        %s158 = sand.u32 %s42, 1
        %s159 = scalar_lea.sflag [#allocation3], %s158
        %s160 = sand.u32 %s42, 1
        %s161 = smul.addr %s160, 16
        %s162 = scalar_lea.vmem [#allocation2], %s161
        // Predicated region
        $region25: #{tpu_custom_call.1} parent=23 // pred_check
          %p163 = pneg %p55
        $region26: #{tpu_custom_call.1} parent=23 // pred_check_branch
          %165 = sbr.rel (%p163) target = $region28
        $region27: #{tpu_custom_call.1} parent=23 // pred_region
          %166 = dma.done %s159, 256
        $region28: #{tpu_custom_call.1} parent=23 // pred_fallthru
          _
        %s167 = sand.u32 %s42, 1
        %s168 = scalar_lea.sflag [#allocation3], %s167
        %s169 = sand.u32 %s42, 1
        %s170 = smul.addr %s169, 16
        %s171 = scalar_lea.vmem [#allocation2], %s170
        %p172 = pneg %p55
        %p173 = pneg %p52
        %p174 = pneg %p83
        %p175 = pneg %p80
        %s176 = sadd.s32 %s24, %s25
        %p177 = scmp.lt.s32.totalorder %s176, 1
        %s178 = scalar_select %p177, %s176, 1
        %s179 = smul.addr %s178, 4
        %s180 = scalar_lea.vmem %s1, %s179
        %p181 = pneg %p111
        %p182 = pneg %p108
        %s183 = sand.u32 %s98, 1
        %s184 = scalar_lea.sflag [#allocation4], %s183
        %s185 = sand.u32 %s98, 1
        %s186 = smul.addr %s185, 4
        %s187 = scalar_lea.vmem [#allocation5], %s186
        %s188 = smul.u32 4, %s25
        %s189 = sadd.s32 %s24, %s25
        %p190 = scmp.lt.s32.totalorder %s189, 1
        %s191 = scalar_select %p190, %s189, 1
        %s192 = smul.addr %s191, 4
        %s193 = scalar_lea.vmem %s1, %s192
        %s194 = sadd.s32 %s24, %s25
        %s195 = sadd.s32 %s24, %s25
        %v196 = vld [vmem:[%s162] sm:$0xff]
        %v197 = vld [vmem:[%s162 + $0x8] sm:$0xff]
        %v200 = vcombine.high %v196, %v196
        %v201 = vcombine.high %v197, %v197
        %vm204 = vcmask 1043456
        %v205 = vsel %vm204, %v196, 0.0
        %v206 = vsel %vm204, %v200, 0.0
        %v207 = vadd.f32 %v205, %v206
        %v208 = vsel %vm204, %v197, 0.0
        %v209 = vadd.f32 %v207, %v208
        %v210 = vsel %vm204, %v201, 0.0
        %v211 = vadd.f32 %v209, %v210
        %212 = vadd.xlane.f32.xlu0 %v211
        %v213 = vpop.xlane.xlu0 %212
        %vm214 = vcmask 3072
        %215 = vst.msk [vmem:[%s193] sm:$0xf] %vm214, %v213
        %216 = vmatprep.subr.mxu0 0.0
        %217 = vmatpush1.xpose.msra.mxu0 0.0
        %218 = vmatprep.subr.mxu0 0.0
        %219 = vmatpush1.xpose.msra.mxu0 0.0
        %220 = vmatprep.subr.mxu0 0.0
        %221 = vmatpush1.xpose.msra.mxu0 0.0
        %222 = vmatprep.subr.mxu0 0.0
        %223 = vmatpush1.xpose.msra.mxu0 0.0
        %224 = vmatprep.subr.mxu0 0.0
        %225 = vmatpush1.xpose.msra.mxu0 0.0
        %226 = vmatprep.subr.mxu0 0.0
        %227 = vmatpush1.xpose.msra.mxu0 0.0
        %228 = vmatprep.subr.mxu0 0.0
        %229 = vmatpush1.xpose.msra.mxu0 0.0
        %230 = vmatprep.subr.mxu0 0.0
        %231 = vmatpush1.xpose.msra.mxu0 0.0
        %232 = vmatprep.subr.mxu0 0.0
        %233 = vmatpush1.xpose.msra.mxu0 0.0
        %234 = vmatprep.subr.mxu0 0.0
        %235 = vmatpush1.xpose.msra.mxu0 0.0
        %236 = vmatprep.subr.mxu0 0.0
        %237 = vmatpush1.xpose.msra.mxu0 0.0
        %238 = vmatprep.subr.mxu0 0.0
        %239 = vmatpush1.xpose.msra.mxu0 0.0
        %240 = vmatprep.subr.mxu0 0.0
        %241 = vmatpush1.xpose.msra.mxu0 0.0
        %242 = vmatprep.subr.mxu0 0.0
        %243 = vmatpush1.xpose.msra.mxu0 0.0
        %244 = vmatprep.subr.mxu0 0.0
        %245 = vmatpush1.xpose.msra.mxu0 0.0
        %246 = vmatprep.subr.mxu0 %v200
        %247 = vmatpush1.xpose.msra.mxu0 %v196
        %248 = vmatprep.subr.mxu0 0.0
        %249 = vmatpush2.xpose.msra.mxu0 0.0
        %250 = vmatprep.subr.mxu0 0.0
        %251 = vmatpush2.xpose.msra.mxu0 0.0
        %252 = vmatprep.subr.mxu0 0.0
        %253 = vmatpush2.xpose.msra.mxu0 0.0
        %254 = vmatprep.subr.mxu0 0.0
        %255 = vmatpush2.xpose.msra.mxu0 0.0
        %256 = vmatprep.subr.mxu0 0.0
        %257 = vmatpush2.xpose.msra.mxu0 0.0
        %258 = vmatprep.subr.mxu0 0.0
        %259 = vmatpush2.xpose.msra.mxu0 0.0
        %260 = vmatprep.subr.mxu0 0.0
        %261 = vmatpush2.xpose.msra.mxu0 0.0
        %262 = vmatprep.subr.mxu0 0.0
        %263 = vmatpush2.xpose.msra.mxu0 0.0
        %264 = vmatprep.subr.mxu0 0.0
        %265 = vmatpush2.xpose.msra.mxu0 0.0
        %266 = vmatprep.subr.mxu0 0.0
        %267 = vmatpush2.xpose.msra.mxu0 0.0
        %268 = vmatprep.subr.mxu0 0.0
        %269 = vmatpush2.xpose.msra.mxu0 0.0
        %270 = vmatprep.subr.mxu0 0.0
        %271 = vmatpush2.xpose.msra.mxu0 0.0
        %272 = vmatprep.subr.mxu0 0.0
        %273 = vmatpush2.xpose.msra.mxu0 0.0
        %274 = vmatprep.subr.mxu0 0.0
        %275 = vmatpush2.xpose.msra.mxu0 0.0
        %276 = vmatprep.subr.mxu0 0.0
        %277 = vmatpush2.xpose.msra.mxu0 0.0
        %278 = vmatprep.subr.mxu0 0.0
        %279 = vmatpush2.xpose.msra.mxu0 0.0
        %280 = vmatprep.mubr.f32.mxu0 %v200
        %281 = vmatmul.mubr.f32.gmra.mxu0 %v196
        %v282 = vpop.f32.mrf.mxu0
        %v283 = vadd.f32 0.0, %v282
        %v284 = vpop.f32.mrf.mxu0
        %285 = vdwg.mxu0
        %286 = vmatprep.subr.mxu0 0.0
        %287 = vmatpush1.xpose.msra.mxu0 0.0
        %288 = vmatprep.subr.mxu0 0.0
        %289 = vmatpush1.xpose.msra.mxu0 0.0
        %290 = vmatprep.subr.mxu0 0.0
        %291 = vmatpush1.xpose.msra.mxu0 0.0
        %292 = vmatprep.subr.mxu0 0.0
        %293 = vmatpush1.xpose.msra.mxu0 0.0
        %294 = vmatprep.subr.mxu0 0.0
        %295 = vmatpush1.xpose.msra.mxu0 0.0
        %296 = vmatprep.subr.mxu0 0.0
        %297 = vmatpush1.xpose.msra.mxu0 0.0
        %298 = vmatprep.subr.mxu0 0.0
        %299 = vmatpush1.xpose.msra.mxu0 0.0
        %300 = vmatprep.subr.mxu0 0.0
        %301 = vmatpush1.xpose.msra.mxu0 0.0
        %302 = vmatprep.subr.mxu0 0.0
        %303 = vmatpush1.xpose.msra.mxu0 0.0
        %304 = vmatprep.subr.mxu0 0.0
        %305 = vmatpush1.xpose.msra.mxu0 0.0
        %306 = vmatprep.subr.mxu0 0.0
        %307 = vmatpush1.xpose.msra.mxu0 0.0
        %308 = vmatprep.subr.mxu0 0.0
        %309 = vmatpush1.xpose.msra.mxu0 0.0
        %310 = vmatprep.subr.mxu0 0.0
        %311 = vmatpush1.xpose.msra.mxu0 0.0
        %312 = vmatprep.subr.mxu0 0.0
        %313 = vmatpush1.xpose.msra.mxu0 0.0
        %314 = vmatprep.subr.mxu0 0.0
        %315 = vmatpush1.xpose.msra.mxu0 0.0
        %316 = vmatprep.subr.mxu0 %v201
        %317 = vmatpush1.xpose.msra.mxu0 %v197
        %318 = vmatprep.subr.mxu0 0.0
        %319 = vmatpush2.xpose.msra.mxu0 0.0
        %320 = vmatprep.subr.mxu0 0.0
        %321 = vmatpush2.xpose.msra.mxu0 0.0
        %322 = vmatprep.subr.mxu0 0.0
        %323 = vmatpush2.xpose.msra.mxu0 0.0
        %324 = vmatprep.subr.mxu0 0.0
        %325 = vmatpush2.xpose.msra.mxu0 0.0
        %326 = vmatprep.subr.mxu0 0.0
        %327 = vmatpush2.xpose.msra.mxu0 0.0
        %328 = vmatprep.subr.mxu0 0.0
        %329 = vmatpush2.xpose.msra.mxu0 0.0
        %330 = vmatprep.subr.mxu0 0.0
        %331 = vmatpush2.xpose.msra.mxu0 0.0
        %332 = vmatprep.subr.mxu0 0.0
        %333 = vmatpush2.xpose.msra.mxu0 0.0
        %334 = vmatprep.subr.mxu0 0.0
        %335 = vmatpush2.xpose.msra.mxu0 0.0
        %336 = vmatprep.subr.mxu0 0.0
        %337 = vmatpush2.xpose.msra.mxu0 0.0
        %338 = vmatprep.subr.mxu0 0.0
        %339 = vmatpush2.xpose.msra.mxu0 0.0
        %340 = vmatprep.subr.mxu0 0.0
        %341 = vmatpush2.xpose.msra.mxu0 0.0
        %342 = vmatprep.subr.mxu0 0.0
        %343 = vmatpush2.xpose.msra.mxu0 0.0
        %344 = vmatprep.subr.mxu0 0.0
        %345 = vmatpush2.xpose.msra.mxu0 0.0
        %346 = vmatprep.subr.mxu0 0.0
        %347 = vmatpush2.xpose.msra.mxu0 0.0
        %348 = vmatprep.subr.mxu0 0.0
        %349 = vmatpush2.xpose.msra.mxu0 0.0
        %350 = vmatprep.mubr.f32.mxu0 %v201
        %351 = vmatmul.mubr.f32.gmra.mxu0 %v197
        %v352 = vpop.f32.mrf.mxu0
        %v353 = vadd.f32 %v283, %v352
        %v354 = vpop.f32.mrf.mxu0
        %355 = vdwg.mxu0
        %vm356 = vcmask 27648
        %357 = vst.msk [vmem:[%s187] sm:$0xf] %vm356, %v353
        %s358 = sadd.s32 %s24, %s25
        %p359 = scmp.lt.s32.totalorder %s358, 1
        %s360 = scalar_select %p359, %s358, 1
        %s361 = smul.addr %s360, 4
        %s362 = scalar_lea.vmem %s1, %s361
        %s363 = sand.u32 %s98, 1
        %s364 = scalar_lea.sflag [#allocation4], %s363
        %s365 = sand.u32 %s98, 1
        %s366 = smul.addr %s365, 4
        %s367 = scalar_lea.vmem [#allocation5], %s366
        // Predicated region
        $region29: #{tpu_custom_call.1} parent=23 // pred_check
          %p368 = pneg %p80
        $region30: #{tpu_custom_call.1} parent=23 // pred_check_branch
          %370 = sbr.rel (%p368) target = $region32
        $region31: #{tpu_custom_call.1} parent=23 // pred_region
          %s371 = sadd.s32 %s24, %s25
        $region32: #{tpu_custom_call.1} parent=23 // pred_fallthru
          _
        // Predicated region
        $region33: #{tpu_custom_call.1} parent=23 // pred_check
          %p372 = pneg %p108
        $region34: #{tpu_custom_call.1} parent=23 // pred_check_branch
          %374 = sbr.rel (%p372) target = $region36
        $region35: #{tpu_custom_call.1} parent=23 // pred_region
          %s375 = sadd.s32 %s24, %s25
          %s377 = ssub.s32 64, 64
          %378 = vsyncadd %s364, %s377
          %s379 = smul.addr %s375, 64
          %s380 = scalar_lea.hbm %s2, %s379
          %s382 = sshll.u32 %s367, 4
          %s383 = int_to_ptr.vmem [resolvable:$true] %s382
          %385 = dma.vmem_to_hbm [thread:$0]  %s383, 64, %s380, %s364
        $region36: #{tpu_custom_call.1} parent=23 // pred_fallthru
          _
      $region24: #{tpu_custom_call.1} parent=5 // pred_fallthru
        _
      %p386 = scmp.le.s32.totalorder 2, %s15
      // Predicated region
      $region37: #{tpu_custom_call.1} parent=5 // pred_check
        %p387 = pneg %p386
      $region38: #{tpu_custom_call.1} parent=5 // pred_check_branch
        %389 = sbr.rel (%p387) target = $region40
      $region39: #{tpu_custom_call.1} parent=5 // pred_region
        %s390 = ssub.s32 %s15, 2
        // Predicated region
        $region41: #{tpu_custom_call.1} parent=39 // pred_check
          %p391 = pneg %p86
        $region42: #{tpu_custom_call.1} parent=39 // pred_check_branch
          %393 = sbr.rel (%p391) target = $region44
        $region43: #{tpu_custom_call.1} parent=39 // pred_region
          %s394 = sadd.s32 %s26, %s27
          %p395 = scmp.lt.s32.totalorder %s394, 1
          %s396 = scalar_select %p395, %s394, 1
          %s397 = smul.addr %s396, 4
          %s398 = scalar_lea.vmem %s1, %s397
        $region44: #{tpu_custom_call.1} parent=39 // pred_fallthru
          _
        // Predicated region
        $region45: #{tpu_custom_call.1} parent=39 // pred_check
          %p399 = pneg %p114
        $region46: #{tpu_custom_call.1} parent=39 // pred_check_branch
          %401 = sbr.rel (%p399) target = $region48
        $region47: #{tpu_custom_call.1} parent=39 // pred_region
          %s402 = sand.u32 %s99, 1
          %s403 = scalar_lea.sflag [#allocation4], %s402
          %s404 = sand.u32 %s99, 1
          %s405 = smul.addr %s404, 4
          %s406 = scalar_lea.vmem [#allocation5], %s405
          %407 = dma.done %s403, 64
        $region48: #{tpu_custom_call.1} parent=39 // pred_fallthru
          _
      $region40: #{tpu_custom_call.1} parent=5 // pred_fallthru
        _
    $region6: #{tpu_custom_call.1} parent=1 // loop_footer
      %s19 = sadd.s32 1, %s15
    $region7: #{tpu_custom_call.1} parent=1 // loop_footer_branch
      %14 = sbr.rel target = $region3
    $region8: #{tpu_custom_call.1} parent=1 // loop_exit
      _
    %408 = vsyncpa [#allocation3], 1
    %s409 = scalar_lea.sflag [#allocation3], 1
    %410 = vsyncpa %s409, 1
    %411 = vsyncpa [#allocation4], 1
    %s412 = scalar_lea.sflag [#allocation4], 1
    %413 = vsyncpa %s412, 1

</llo_original>
